<compile_context>
chip_gen: v5e
topology: v5e:2x2
jax: 0.10.0
libtpu: 0.0.40
codegen_flags: <defaults>
</compile_context>

<pallas_src>
import numpy as np
import jax
import jax.numpy as jnp
from jax.experimental import pallas as pl
from jax.experimental.pallas import tpu as pltpu


def _iteration_step_kernel(alpha_ref,                 # SMEM (1,1)  alpha
                           dz_ref,                    # VMEM (1,2H,W) [dirty; z]
                           pr_ref, pi_ref,            # VMEM (1,H,W)  re/im fpsf
                           fhr_ref, fhi_ref,          # VMEM (H,H) bf16 DFT (rows)
                           fhs_ref, fhd_ref,          # VMEM (H,H) bf16 fhr+fhi / fhr-fhi
                           fwr_ref, fwi_ref,          # VMEM (W,W) bf16 DFT (cols)
                           out_ref):                  # VMEM (1,H,W) f32
    f32 = jnp.float32
    bf16 = jnp.bfloat16

    pr = pr_ref[0]
    pim = pi_ref[0]
    H, W = pr.shape
    alpha = alpha_ref[0, 0]

    fhr = fhr_ref[...]
    fhi = fhi_ref[...]
    fhs = fhs_ref[...]          # fhr + fhi (for forward Karatsuba)
    fhd = fhd_ref[...]          # fhr - fhi (for inverse Karatsuba)
    fwr = fwr_ref[...]
    fwi = fwi_ref[...]

    def mm(a, b):
        return jnp.dot(a, b, preferred_element_type=f32)

    # ---- forward FFTs of dirty and z: shared right multiply ----------------
    dzb = dz_ref[0].astype(bf16)                     # (2H, W), both planes
    rr = mm(dzb, fwr)                                # Re(X @ F_W), d and z fused
    ri = mm(dzb, fwi)                                # Im(X @ F_W)

    def left_fft(rr_p, ri_p):
        # (fhr + i*fhi) @ (rr_p + i*ri_p), Karatsuba: 3 matmuls.
        t1 = mm(fhr, rr_p.astype(bf16))
        t2 = mm(fhi, ri_p.astype(bf16))
        t3 = mm(fhs, (rr_p + ri_p).astype(bf16))
        return t1 - t2, t3 - t1 - t2

    fd_r, fd_i = left_fft(rr[:H], ri[:H])            # fft2(dirty)
    fz_r, fz_i = left_fft(rr[H:], ri[H:])            # fft2(z)

    # ---- Fourier-domain Wiener update --------------------------------------
    # numerator = conj(fpsf) * fft2(dirty) + alpha * fft2(z)
    num_r = pr * fd_r + pim * fd_i + alpha * fz_r
    num_i = pr * fd_i - pim * fd_r + alpha * fz_i
    # inv = 1 / ((|fpsf|^2 + alpha) * H * W): ifft scale folded into the
    # EUP approximate reciprocal (free slot relative to the VALU).
    inv = pl.reciprocal((pr * pr + pim * pim + alpha) * f32(H * W), approx=True)
    xr = num_r * inv
    xi = num_i * inv

    # ---- inverse FFT, real part --------------------------------------------
    # A = conj(F_H) @ X  (Karatsuba: 3 matmuls)
    t1 = mm(fhr, xr.astype(bf16))
    t2 = mm(fhi, xi.astype(bf16))
    t3 = mm(fhd, (xr + xi).astype(bf16))
    m_r = t1 + t2                                    # Re(A)
    m_i = t3 - t1 + t2                               # Im(A)
    # x = Re(A @ conj(F_W)) = m_r @ fwr + m_i @ fwi  (scale already folded in)
    out_ref[0] = mm(m_r.astype(bf16), fwr) + mm(m_i.astype(bf16), fwi)


def _dft_matrices(n):
    # angle computed from (j*k mod n) to keep f32 phase accuracy at large n
    k = jnp.arange(n, dtype=jnp.int32)
    m = (jnp.outer(k, k) % n).astype(jnp.float32)
    ang = (-2.0 * jnp.pi / n) * m
    return jnp.cos(ang), jnp.sin(ang)


def iteration_step(z, dirty, fpsf, alpha):
    """Pallas implementation of IterationStep.forward.

    z, dirty: (B, H, W) real images
    fpsf:     (B, H, W) complex (FFT of the PSF)
    alpha:    python scalar
    """
    B, H, W = z.shape
    bf16 = jnp.bfloat16

    fhr, fhi = _dft_matrices(H)
    fwr, fwi = _dft_matrices(W)
    fhr_b, fhi_b = fhr.astype(bf16), fhi.astype(bf16)
    fhs_b, fhd_b = (fhr + fhi).astype(bf16), (fhr - fhi).astype(bf16)
    fwr_b, fwi_b = fwr.astype(bf16), fwi.astype(bf16)

    # Stack dirty and z along rows so the forward right-multiply is issued once.
    dz = jnp.concatenate(
        [dirty.astype(jnp.float32), z.astype(jnp.float32)], axis=1)  # (B, 2H, W)
    pr = jnp.real(fpsf).astype(jnp.float32)
    pim = jnp.imag(fpsf).astype(jnp.float32)
    alpha_arr = jnp.full((1, 1), alpha, dtype=jnp.float32)

    plane = lambda b: (b, 0, 0)
    const2d = lambda b: (0, 0)

    # Rough VMEM budget: 6 bf16 DFT matrices (double-buffered), f32 image
    # blocks (double-buffered) and ~2 dozen live H x W f32/bf16 temporaries.
    est_vmem = (
        (4 * H * H + 2 * W * W) * 2 * 2          # constant bf16 matrices x2 buffers
        + (2 * H * W + 3 * H * W) * 4 * 2        # dz + pr + pi + out blocks x2 buffers
        + 32 * H * W * 4                         # live temporaries (generous)
        + (4 << 20)
    )
    vmem_limit = int(min(60 * (1 << 20), max(32 * (1 << 20), est_vmem)))
    # TODO(synk): very large planes (H, W >~ 1024) need K/N tiling of the DFT
    # matmul chain and single-buffered (pl.Buffered(1)) constant matrices to
    # fit v7x's 64 MiB VMEM; not implemented here.

    return pl.pallas_call(
        _iteration_step_kernel,
        out_shape=jax.ShapeDtypeStruct((B, H, W), jnp.float32),
        grid=(B,),
        in_specs=[
            pl.BlockSpec(memory_space=pltpu.MemorySpace.SMEM),   # alpha
            pl.BlockSpec((1, 2 * H, W), plane),                  # [dirty; z]
            pl.BlockSpec((1, H, W), plane),                      # fpsf (real)
            pl.BlockSpec((1, H, W), plane),                      # fpsf (imag)
            pl.BlockSpec((H, H), const2d),                       # fhr
            pl.BlockSpec((H, H), const2d),                       # fhi
            pl.BlockSpec((H, H), const2d),                       # fhr + fhi
            pl.BlockSpec((H, H), const2d),                       # fhr - fhi
            pl.BlockSpec((W, W), const2d),                       # fwr
            pl.BlockSpec((W, W), const2d),                       # fwi
        ],
        out_specs=pl.BlockSpec((1, H, W), plane),
        compiler_params=pltpu.CompilerParams(
            dimension_semantics=("parallel",),
            vmem_limit_bytes=vmem_limit),
    )(alpha_arr, dz, pr, pim, fhr_b, fhi_b, fhs_b, fhd_b, fwr_b, fwi_b)


if __name__ == "__main__":
    key = jax.random.PRNGKey(0)
    B, H, W = 2, 16, 16
    k1, k2, k3 = jax.random.split(key, 3)

    z = jax.random.normal(k1, (B, H, W), dtype=jnp.float32)
    dirty = jax.random.normal(k2, (B, H, W), dtype=jnp.float32)
    # Synthetic PSF -> its 2D FFT, matching the `fpsf` argument of the module.
    psf = jax.random.normal(k3, (B, H, W), dtype=jnp.float32)
    fpsf = jnp.fft.fft2(psf)
    alpha = 0.1

    x = iteration_step(z, dirty, fpsf, alpha)
    x = jax.block_until_ready(x)

    # Plain-JAX reference mirroring the PyTorch forward exactly.
    num = jnp.conj(fpsf) * jnp.fft.fft2(dirty) + alpha * jnp.fft.fft2(z)
    den = (jnp.conj(fpsf) * fpsf).real + alpha
    ref = jnp.fft.ifft2(num / den).real

    err = float(np.max(np.abs(np.asarray(x) - np.asarray(ref))))
    assert np.allclose(np.asarray(x), np.asarray(ref), atol=2e-2, rtol=2e-2), err
    print("KERNEL_OK")
</pallas_src>

<mosaic_0001>
module attributes {stable_mosaic.version = 11 : i64} {
  func.func @_iteration_step_kernel(%arg0: i32, %arg1: memref<1x1xf32, #tpu.memory_space<smem>>, %arg2: memref<1x32x16xf32, #tpu.memory_space<vmem>>, %arg3: memref<1x16x16xf32, #tpu.memory_space<vmem>>, %arg4: memref<1x16x16xf32, #tpu.memory_space<vmem>>, %arg5: memref<16x16xbf16, #tpu.memory_space<vmem>>, %arg6: memref<16x16xbf16, #tpu.memory_space<vmem>>, %arg7: memref<16x16xbf16, #tpu.memory_space<vmem>>, %arg8: memref<16x16xbf16, #tpu.memory_space<vmem>>, %arg9: memref<16x16xbf16, #tpu.memory_space<vmem>>, %arg10: memref<16x16xbf16, #tpu.memory_space<vmem>>, %arg11: memref<1x16x16xf32, #tpu.memory_space<vmem>>) attributes {dimension_semantics = [#tpu.dimension_semantics<parallel>], iteration_bounds = array<i64: 2>, scalar_prefetch = 0 : i64, scratch_operands = 0 : i64, tpu.core_type = #tpu.core_type<tc>, window_params = [{transform_indices = @transform_0, window_bounds = array<i64: 1, 1>}, {transform_indices = @transform_1, window_bounds = array<i64: 1, 32, 16>}, {transform_indices = @transform_2, window_bounds = array<i64: 1, 16, 16>}, {transform_indices = @transform_3, window_bounds = array<i64: 1, 16, 16>}, {pipeline_mode = #tpu.pipeline_mode<synchronous>, transform_indices = @transform_4, window_bounds = array<i64: 16, 16>}, {pipeline_mode = #tpu.pipeline_mode<synchronous>, transform_indices = @transform_5, window_bounds = array<i64: 16, 16>}, {pipeline_mode = #tpu.pipeline_mode<synchronous>, transform_indices = @transform_6, window_bounds = array<i64: 16, 16>}, {pipeline_mode = #tpu.pipeline_mode<synchronous>, transform_indices = @transform_7, window_bounds = array<i64: 16, 16>}, {pipeline_mode = #tpu.pipeline_mode<synchronous>, transform_indices = @transform_8, window_bounds = array<i64: 16, 16>}, {pipeline_mode = #tpu.pipeline_mode<synchronous>, transform_indices = @transform_9, window_bounds = array<i64: 16, 16>}, {transform_indices = @transform_10, window_bounds = array<i64: 1, 16, 16>}]} {
    %c0 = arith.constant 0 : index
    %c0_0 = arith.constant 0 : index
    %c0_1 = arith.constant 0 : index
    %0 = vector.load %arg3[%c0, %c0_0, %c0_1] : memref<1x16x16xf32, #tpu.memory_space<vmem>>, vector<1x16x16xf32>
    %1 = vector.shape_cast %0 : vector<1x16x16xf32> to vector<16x16xf32>
    %c0_2 = arith.constant 0 : index
    %c0_3 = arith.constant 0 : index
    %c0_4 = arith.constant 0 : index
    %2 = vector.load %arg4[%c0_2, %c0_3, %c0_4] : memref<1x16x16xf32, #tpu.memory_space<vmem>>, vector<1x16x16xf32>
    %3 = vector.shape_cast %2 : vector<1x16x16xf32> to vector<16x16xf32>
    %c0_5 = arith.constant 0 : index
    %c0_6 = arith.constant 0 : index
    %4 = memref.load %arg1[%c0_5, %c0_6] : memref<1x1xf32, #tpu.memory_space<smem>>
    %c0_7 = arith.constant 0 : index
    %c0_8 = arith.constant 0 : index
    %5 = vector.load %arg5[%c0_7, %c0_8] : memref<16x16xbf16, #tpu.memory_space<vmem>>, vector<16x16xbf16>
    %c0_9 = arith.constant 0 : index
    %c0_10 = arith.constant 0 : index
    %6 = vector.load %arg6[%c0_9, %c0_10] : memref<16x16xbf16, #tpu.memory_space<vmem>>, vector<16x16xbf16>
    %c0_11 = arith.constant 0 : index
    %c0_12 = arith.constant 0 : index
    %7 = vector.load %arg7[%c0_11, %c0_12] : memref<16x16xbf16, #tpu.memory_space<vmem>>, vector<16x16xbf16>
    %c0_13 = arith.constant 0 : index
    %c0_14 = arith.constant 0 : index
    %8 = vector.load %arg8[%c0_13, %c0_14] : memref<16x16xbf16, #tpu.memory_space<vmem>>, vector<16x16xbf16>
    %c0_15 = arith.constant 0 : index
    %c0_16 = arith.constant 0 : index
    %9 = vector.load %arg9[%c0_15, %c0_16] : memref<16x16xbf16, #tpu.memory_space<vmem>>, vector<16x16xbf16>
    %c0_17 = arith.constant 0 : index
    %c0_18 = arith.constant 0 : index
    %10 = vector.load %arg10[%c0_17, %c0_18] : memref<16x16xbf16, #tpu.memory_space<vmem>>, vector<16x16xbf16>
    %c0_19 = arith.constant 0 : index
    %c0_20 = arith.constant 0 : index
    %c0_21 = arith.constant 0 : index
    %11 = vector.load %arg2[%c0_19, %c0_20, %c0_21] : memref<1x32x16xf32, #tpu.memory_space<vmem>>, vector<1x32x16xf32>
    %12 = vector.shape_cast %11 : vector<1x32x16xf32> to vector<32x16xf32>
    %13 = arith.truncf %12 : vector<32x16xf32> to vector<32x16xbf16>
    %cst = arith.constant dense<0.000000e+00> : vector<32x16xf32>
    %14 = tpu.matmul %13, %9, %cst {dimension_numbers = #tpu.dot_dimension_numbers<[1], [0], [0], [1], [0, 0, 1, 1], [], []>} : vector<32x16xbf16>, vector<16x16xbf16>, vector<32x16xf32> -> vector<32x16xf32>
    %cst_22 = arith.constant dense<0.000000e+00> : vector<32x16xf32>
    %15 = tpu.matmul %13, %10, %cst_22 {dimension_numbers = #tpu.dot_dimension_numbers<[1], [0], [0], [1], [0, 0, 1, 1], [], []>} : vector<32x16xbf16>, vector<16x16xbf16>, vector<32x16xf32> -> vector<32x16xf32>
    %16 = vector.extract_strided_slice %14 {offsets = [0, 0], sizes = [16, 16], strides = [1, 1]} : vector<32x16xf32> to vector<16x16xf32>
    %17 = vector.extract_strided_slice %15 {offsets = [0, 0], sizes = [16, 16], strides = [1, 1]} : vector<32x16xf32> to vector<16x16xf32>
    %18 = arith.truncf %16 : vector<16x16xf32> to vector<16x16xbf16>
    %cst_23 = arith.constant dense<0.000000e+00> : vector<16x16xf32>
    %19 = tpu.matmul %5, %18, %cst_23 {dimension_numbers = #tpu.dot_dimension_numbers<[1], [0], [0], [1], [0, 0, 1, 1], [], []>} : vector<16x16xbf16>, vector<16x16xbf16>, vector<16x16xf32> -> vector<16x16xf32>
    %20 = arith.truncf %17 : vector<16x16xf32> to vector<16x16xbf16>
    %cst_24 = arith.constant dense<0.000000e+00> : vector<16x16xf32>
    %21 = tpu.matmul %6, %20, %cst_24 {dimension_numbers = #tpu.dot_dimension_numbers<[1], [0], [0], [1], [0, 0, 1, 1], [], []>} : vector<16x16xbf16>, vector<16x16xbf16>, vector<16x16xf32> -> vector<16x16xf32>
    %22 = arith.addf %16, %17 : vector<16x16xf32>
    %23 = arith.truncf %22 : vector<16x16xf32> to vector<16x16xbf16>
    %cst_25 = arith.constant dense<0.000000e+00> : vector<16x16xf32>
    %24 = tpu.matmul %7, %23, %cst_25 {dimension_numbers = #tpu.dot_dimension_numbers<[1], [0], [0], [1], [0, 0, 1, 1], [], []>} : vector<16x16xbf16>, vector<16x16xbf16>, vector<16x16xf32> -> vector<16x16xf32>
    %25 = arith.subf %19, %21 : vector<16x16xf32>
    %26 = arith.subf %24, %19 : vector<16x16xf32>
    %27 = arith.subf %26, %21 : vector<16x16xf32>
    %28 = vector.extract_strided_slice %14 {offsets = [16, 0], sizes = [16, 16], strides = [1, 1]} : vector<32x16xf32> to vector<16x16xf32>
    %29 = vector.extract_strided_slice %15 {offsets = [16, 0], sizes = [16, 16], strides = [1, 1]} : vector<32x16xf32> to vector<16x16xf32>
    %30 = arith.truncf %28 : vector<16x16xf32> to vector<16x16xbf16>
    %cst_26 = arith.constant dense<0.000000e+00> : vector<16x16xf32>
    %31 = tpu.matmul %5, %30, %cst_26 {dimension_numbers = #tpu.dot_dimension_numbers<[1], [0], [0], [1], [0, 0, 1, 1], [], []>} : vector<16x16xbf16>, vector<16x16xbf16>, vector<16x16xf32> -> vector<16x16xf32>
    %32 = arith.truncf %29 : vector<16x16xf32> to vector<16x16xbf16>
    %cst_27 = arith.constant dense<0.000000e+00> : vector<16x16xf32>
    %33 = tpu.matmul %6, %32, %cst_27 {dimension_numbers = #tpu.dot_dimension_numbers<[1], [0], [0], [1], [0, 0, 1, 1], [], []>} : vector<16x16xbf16>, vector<16x16xbf16>, vector<16x16xf32> -> vector<16x16xf32>
    %34 = arith.addf %28, %29 : vector<16x16xf32>
    %35 = arith.truncf %34 : vector<16x16xf32> to vector<16x16xbf16>
    %cst_28 = arith.constant dense<0.000000e+00> : vector<16x16xf32>
    %36 = tpu.matmul %7, %35, %cst_28 {dimension_numbers = #tpu.dot_dimension_numbers<[1], [0], [0], [1], [0, 0, 1, 1], [], []>} : vector<16x16xbf16>, vector<16x16xbf16>, vector<16x16xf32> -> vector<16x16xf32>
    %37 = arith.subf %31, %33 : vector<16x16xf32>
    %38 = arith.subf %36, %31 : vector<16x16xf32>
    %39 = arith.subf %38, %33 : vector<16x16xf32>
    %40 = arith.mulf %1, %25 : vector<16x16xf32>
    %41 = arith.mulf %3, %27 : vector<16x16xf32>
    %42 = arith.addf %40, %41 : vector<16x16xf32>
    %43 = vector.broadcast %4 : f32 to vector<16x16xf32>
    %44 = arith.mulf %43, %37 : vector<16x16xf32>
    %45 = arith.addf %42, %44 : vector<16x16xf32>
    %46 = arith.mulf %1, %27 : vector<16x16xf32>
    %47 = arith.mulf %3, %25 : vector<16x16xf32>
    %48 = arith.subf %46, %47 : vector<16x16xf32>
    %49 = vector.broadcast %4 : f32 to vector<16x16xf32>
    %50 = arith.mulf %49, %39 : vector<16x16xf32>
    %51 = arith.addf %48, %50 : vector<16x16xf32>
    %52 = arith.mulf %1, %1 : vector<16x16xf32>
    %53 = arith.mulf %3, %3 : vector<16x16xf32>
    %54 = arith.addf %52, %53 : vector<16x16xf32>
    %55 = vector.broadcast %4 : f32 to vector<16x16xf32>
    %56 = arith.addf %54, %55 : vector<16x16xf32>
    %cst_29 = arith.constant 2.560000e+02 : f32
    %57 = vector.broadcast %cst_29 : f32 to vector<16x16xf32>
    %58 = arith.mulf %56, %57 : vector<16x16xf32>
    %59 = tpu.reciprocal %58 {approx = true} : vector<16x16xf32> -> vector<16x16xf32>
    %60 = arith.mulf %45, %59 : vector<16x16xf32>
    %61 = arith.mulf %51, %59 : vector<16x16xf32>
    %62 = arith.truncf %60 : vector<16x16xf32> to vector<16x16xbf16>
    %cst_30 = arith.constant dense<0.000000e+00> : vector<16x16xf32>
    %63 = tpu.matmul %5, %62, %cst_30 {dimension_numbers = #tpu.dot_dimension_numbers<[1], [0], [0], [1], [0, 0, 1, 1], [], []>} : vector<16x16xbf16>, vector<16x16xbf16>, vector<16x16xf32> -> vector<16x16xf32>
    %64 = arith.truncf %61 : vector<16x16xf32> to vector<16x16xbf16>
    %cst_31 = arith.constant dense<0.000000e+00> : vector<16x16xf32>
    %65 = tpu.matmul %6, %64, %cst_31 {dimension_numbers = #tpu.dot_dimension_numbers<[1], [0], [0], [1], [0, 0, 1, 1], [], []>} : vector<16x16xbf16>, vector<16x16xbf16>, vector<16x16xf32> -> vector<16x16xf32>
    %66 = arith.addf %60, %61 : vector<16x16xf32>
    %67 = arith.truncf %66 : vector<16x16xf32> to vector<16x16xbf16>
    %cst_32 = arith.constant dense<0.000000e+00> : vector<16x16xf32>
    %68 = tpu.matmul %8, %67, %cst_32 {dimension_numbers = #tpu.dot_dimension_numbers<[1], [0], [0], [1], [0, 0, 1, 1], [], []>} : vector<16x16xbf16>, vector<16x16xbf16>, vector<16x16xf32> -> vector<16x16xf32>
    %69 = arith.addf %63, %65 : vector<16x16xf32>
    %70 = arith.subf %68, %63 : vector<16x16xf32>
    %71 = arith.addf %70, %65 : vector<16x16xf32>
    %72 = arith.truncf %69 : vector<16x16xf32> to vector<16x16xbf16>
    %cst_33 = arith.constant dense<0.000000e+00> : vector<16x16xf32>
    %73 = tpu.matmul %72, %9, %cst_33 {dimension_numbers = #tpu.dot_dimension_numbers<[1], [0], [0], [1], [0, 0, 1, 1], [], []>} : vector<16x16xbf16>, vector<16x16xbf16>, vector<16x16xf32> -> vector<16x16xf32>
    %74 = arith.truncf %71 : vector<16x16xf32> to vector<16x16xbf16>
    %cst_34 = arith.constant dense<0.000000e+00> : vector<16x16xf32>
    %75 = tpu.matmul %74, %10, %cst_34 {dimension_numbers = #tpu.dot_dimension_numbers<[1], [0], [0], [1], [0, 0, 1, 1], [], []>} : vector<16x16xbf16>, vector<16x16xbf16>, vector<16x16xf32> -> vector<16x16xf32>
    %76 = arith.addf %73, %75 : vector<16x16xf32>
    %c0_35 = arith.constant 0 : index
    %c0_36 = arith.constant 0 : index
    %c0_37 = arith.constant 0 : index
    %77 = vector.load %arg11[%c0_35, %c0_36, %c0_37] : memref<1x16x16xf32, #tpu.memory_space<vmem>>, vector<1x16x16xf32>
    %78 = vector.shape_cast %77 : vector<1x16x16xf32> to vector<16x16xf32>
    %79 = vector.shape_cast %76 : vector<16x16xf32> to vector<1x16x16xf32>
    tpu.vector_store %arg11[%c0_35, %c0_36, %c0_37], %79 {strides = array<i32>} : memref<1x16x16xf32, #tpu.memory_space<vmem>>, vector<1x16x16xf32>,
    return
  }
  func.func @transform_0(%arg0: i32) -> (i32, i32) {
    %c0_i32 = arith.constant 0 : i32
    %c0_i32_0 = arith.constant 0 : i32
    %c0_i32_1 = arith.constant 0 : i32
    return %c0_i32, %c0_i32_0 : i32, i32
  }
  func.func @transform_1(%arg0: i32) -> (i32, i32, i32) {
    %c0_i32 = arith.constant 0 : i32
    %c0_i32_0 = arith.constant 0 : i32
    %c0_i32_1 = arith.constant 0 : i32
    return %arg0, %c0_i32, %c0_i32_0 : i32, i32, i32
  }
  func.func @transform_2(%arg0: i32) -> (i32, i32, i32) {
    %c0_i32 = arith.constant 0 : i32
    %c0_i32_0 = arith.constant 0 : i32
    %c0_i32_1 = arith.constant 0 : i32
    return %arg0, %c0_i32, %c0_i32_0 : i32, i32, i32
  }
  func.func @transform_3(%arg0: i32) -> (i32, i32, i32) {
    %c0_i32 = arith.constant 0 : i32
    %c0_i32_0 = arith.constant 0 : i32
    %c0_i32_1 = arith.constant 0 : i32
    return %arg0, %c0_i32, %c0_i32_0 : i32, i32, i32
  }
  func.func @transform_4(%arg0: i32) -> (i32, i32) {
    %c0_i32 = arith.constant 0 : i32
    %c0_i32_0 = arith.constant 0 : i32
    %c0_i32_1 = arith.constant 0 : i32
    return %c0_i32, %c0_i32_0 : i32, i32
  }
  func.func @transform_5(%arg0: i32) -> (i32, i32) {
    %c0_i32 = arith.constant 0 : i32
    %c0_i32_0 = arith.constant 0 : i32
    %c0_i32_1 = arith.constant 0 : i32
    return %c0_i32, %c0_i32_0 : i32, i32
  }
  func.func @transform_6(%arg0: i32) -> (i32, i32) {
    %c0_i32 = arith.constant 0 : i32
    %c0_i32_0 = arith.constant 0 : i32
    %c0_i32_1 = arith.constant 0 : i32
    return %c0_i32, %c0_i32_0 : i32, i32
  }
  func.func @transform_7(%arg0: i32) -> (i32, i32) {
    %c0_i32 = arith.constant 0 : i32
    %c0_i32_0 = arith.constant 0 : i32
    %c0_i32_1 = arith.constant 0 : i32
    return %c0_i32, %c0_i32_0 : i32, i32
  }
  func.func @transform_8(%arg0: i32) -> (i32, i32) {
    %c0_i32 = arith.constant 0 : i32
    %c0_i32_0 = arith.constant 0 : i32
    %c0_i32_1 = arith.constant 0 : i32
    return %c0_i32, %c0_i32_0 : i32, i32
  }
  func.func @transform_9(%arg0: i32) -> (i32, i32) {
    %c0_i32 = arith.constant 0 : i32
    %c0_i32_0 = arith.constant 0 : i32
    %c0_i32_1 = arith.constant 0 : i32
    return %c0_i32, %c0_i32_0 : i32, i32
  }
  func.func @transform_10(%arg0: i32) -> (i32, i32, i32) {
    %c0_i32 = arith.constant 0 : i32
    %c0_i32_0 = arith.constant 0 : i32
    %c0_i32_1 = arith.constant 0 : i32
    return %arg0, %c0_i32, %c0_i32_0 : i32, i32, i32
  }
}

</mosaic_0001>

<llo_original>
// kernel: tpu_custom_call.1
$region0: #{tpu_custom_call.1}
  #allocation0 [shape = 'u32[]', space=smem, size = 0x4, offset = 0x4, fixed_abs, tag = 'smem constant byte address 0x4 - core index']
  #allocation1 [shape = 'u32[72,128]{1,0:T(1,128)}', space=vmem, size = 0x9000, scoped, tag = 'internal scratch']
  #allocation2 [shape = 'f32[1,1]{1,0:T(1,128)S(6)}', space=smem, size = 0x200, scoped, tag = 'scoped memory for tpu_custom_call.1']
  %s0 = inlined_call_operand.<no memory space> [shape: f32[1,1], index: 0, kind: input, shape index: {}]
  %s1 = inlined_call_operand.vmem [shape: f32[2,32,16], index: 1, kind: input, shape index: {}]
  %s2 = inlined_call_operand.vmem [shape: f32[2,16,16], index: 2, kind: input, shape index: {}]
  %s3 = inlined_call_operand.vmem [shape: f32[2,16,16], index: 3, kind: input, shape index: {}]
  %s4 = inlined_call_operand.vmem [shape: bf16[16,16], index: 4, kind: input, shape index: {}]
  %s5 = inlined_call_operand.vmem [shape: bf16[16,16], index: 5, kind: input, shape index: {}]
  %s6 = inlined_call_operand.vmem [shape: bf16[16,16], index: 6, kind: input, shape index: {}]
  %s7 = inlined_call_operand.vmem [shape: bf16[16,16], index: 7, kind: input, shape index: {}]
  %s8 = inlined_call_operand.hbm [shape: bf16[16,16], index: 8, kind: input, shape index: {}]
  %s9 = inlined_call_operand.vmem [shape: bf16[16,16], index: 9, kind: input, shape index: {}]
  %s10 = inlined_call_operand.hbm [shape: f32[2,16,16], index: 10, kind: output, shape index: {}]
  %s11 = sld [smem:[#allocation0]]
  $region77: #{tpu_custom_call.1} parent=0
    _
  %s13 = ssub.s32 1, %s11
  %s14 = scalar_select 0, %s13, %s11
  %15 = sst [smem:[#allocation2]] %s0
  $region1: #{tpu_custom_call.1} parent=0
    #allocation3 [shape = 'u8[4096]{0}', space=vmem, size = 0x1000, scoped, tag = 'input window, operand 8, single buffered']
    #allocation4 [shape = 's32[2]{0}', space=sflag, size = 0x8, scoped, tag = 'scoped memory for tpu_custom_call.1']
    #allocation5 [shape = 's32[2]{0}', space=sflag, size = 0x8, scoped, tag = 'scoped memory for tpu_custom_call.1']
    #allocation6 [shape = 'u8[16384]{0}', space=vmem, size = 0x4000, scoped, tag = 'output window, operand 0']
    %16 = vsyncpa [#allocation4], 0
    %17 = vsyncpa [#allocation5], 0
    %s18 = scalar_lea.sflag [#allocation5], 1
    %19 = vsyncpa %s18, 0
    loop: start=0, step=1, limit=4
    $region2: #{tpu_custom_call.1} parent=1 // loop_pre_header
      _
    $region3: #{tpu_custom_call.1} parent=1 // loop_header
      %s21 = sphi 0, %s25
      %p22 = scmp.ge.s32.totalorder %s21, 4
      %s29 = sphi 0, %s29
      %s31 = sphi 0, %s29
      %s32 = sphi 0, %s31
      %s46 = sphi 0, %s32
      %s52 = sphi 0, %s54
      %s55 = sphi 0, %s52
      %s56 = sphi 0, %s55
      %s72 = sphi 0, %s56
      %s78 = sphi 0, %s80
      %s81 = sphi 0, %s78
      %s82 = sphi 0, %s81
      %s98 = sphi 0, %s82
      %s104 = sphi 0, %s106
      %s107 = sphi 0, %s104
      %s108 = sphi 0, %s107
      %s124 = sphi 0, %s108
      %s128 = sphi 0, %s128
      %s130 = sphi 0, %s128
      %s131 = sphi 0, %s130
      %s145 = sphi 0, %s131
      %s149 = sphi 0, %s149
      %s151 = sphi 0, %s149
      %s152 = sphi 0, %s151
      %s166 = sphi 0, %s152
      %s170 = sphi 0, %s170
      %s172 = sphi 0, %s170
      %s173 = sphi 0, %s172
      %s187 = sphi 0, %s173
      %s191 = sphi 0, %s191
      %s193 = sphi 0, %s191
      %s194 = sphi 0, %s193
      %s208 = sphi 0, %s194
      %s212 = sphi 0, %s212
      %s214 = sphi 0, %s212
      %s215 = sphi 0, %s214
      %s229 = sphi 0, %s215
      %s233 = sphi 0, %s233
      %s235 = sphi 0, %s233
      %s236 = sphi 0, %s235
      %s250 = sphi 0, %s236
      %s256 = sphi 0, %s258
      %s259 = sphi 0, %s256
      %s260 = sphi 0, %s259
      %s276 = sphi 0, %s260
    $region4: #{tpu_custom_call.1} parent=1 // loop_header_branch
      %24 = sbr.rel (%p22) target = $region8
    $region5: #{tpu_custom_call.1} parent=1 // loop_body
      %s26 = ssub.s32 %s21, 1
      %s27 = ssub.s32 %s21, 2
      %s28 = sadd.s32 %s21, 1
      %s30 = sadd.s32 %s29, 1
      %p33 = scmp.eq.s32.totalorder %s21, 1
      %p34 = scmp.ne.s32.totalorder %s29, %s31
      %p35 = scmp.eq.s32.totalorder %s21, 0
      %p36 = por %p34, %p35
      %p37 = scmp.ne.s32.totalorder %s29, %s31
      %p38 = scmp.eq.s32.totalorder %s26, 1
      %p39 = por %p37, %p38
      %p40 = scmp.ne.s32.totalorder %s31, %s32
      %p41 = scmp.eq.s32.totalorder %s26, 0
      %p42 = por %p40, %p41
      %p43 = scmp.ne.s32.totalorder %s31, %s32
      %p44 = scmp.eq.s32.totalorder %s27, 1
      %p45 = por %p43, %p44
      %p47 = scmp.ne.s32.totalorder %s32, %s46
      %p48 = scmp.eq.s32.totalorder %s27, 0
      %p49 = por %p47, %p48
      %s50 = ssub.s32 %s21, %s28
      %p51 = scmp.eq.s32.totalorder %s50, 0
      %s53 = sadd.s32 %s52, 1
      %s54 = scalar_select %p51, %s52, %s53
      %p57 = pneg %p51
      %p58 = scmp.eq.s32.totalorder %s21, 1
      %p59 = por %p57, %p58
      %p60 = scmp.ne.s32.totalorder %s52, %s55
      %p61 = scmp.eq.s32.totalorder %s21, 0
      %p62 = por %p60, %p61
      %p63 = scmp.ne.s32.totalorder %s52, %s55
      %p64 = scmp.eq.s32.totalorder %s26, 1
      %p65 = por %p63, %p64
      %p66 = scmp.ne.s32.totalorder %s55, %s56
      %p67 = scmp.eq.s32.totalorder %s26, 0
      %p68 = por %p66, %p67
      %p69 = scmp.ne.s32.totalorder %s55, %s56
      %p70 = scmp.eq.s32.totalorder %s27, 1
      %p71 = por %p69, %p70
      %p73 = scmp.ne.s32.totalorder %s56, %s72
      %p74 = scmp.eq.s32.totalorder %s27, 0
      %p75 = por %p73, %p74
      %s76 = ssub.s32 %s21, %s28
      %p77 = scmp.eq.s32.totalorder %s76, 0
      %s79 = sadd.s32 %s78, 1
      %s80 = scalar_select %p77, %s78, %s79
      %p83 = pneg %p77
      %p84 = scmp.eq.s32.totalorder %s21, 1
      %p85 = por %p83, %p84
      %p86 = scmp.ne.s32.totalorder %s78, %s81
      %p87 = scmp.eq.s32.totalorder %s21, 0
      %p88 = por %p86, %p87
      %p89 = scmp.ne.s32.totalorder %s78, %s81
      %p90 = scmp.eq.s32.totalorder %s26, 1
      %p91 = por %p89, %p90
      %p92 = scmp.ne.s32.totalorder %s81, %s82
      %p93 = scmp.eq.s32.totalorder %s26, 0
      %p94 = por %p92, %p93
      %p95 = scmp.ne.s32.totalorder %s81, %s82
      %p96 = scmp.eq.s32.totalorder %s27, 1
      %p97 = por %p95, %p96
      %p99 = scmp.ne.s32.totalorder %s82, %s98
      %p100 = scmp.eq.s32.totalorder %s27, 0
      %p101 = por %p99, %p100
      %s102 = ssub.s32 %s21, %s28
      %p103 = scmp.eq.s32.totalorder %s102, 0
      %s105 = sadd.s32 %s104, 1
      %s106 = scalar_select %p103, %s104, %s105
      %p109 = pneg %p103
      %p110 = scmp.eq.s32.totalorder %s21, 1
      %p111 = por %p109, %p110
      %p112 = scmp.ne.s32.totalorder %s104, %s107
      %p113 = scmp.eq.s32.totalorder %s21, 0
      %p114 = por %p112, %p113
      %p115 = scmp.ne.s32.totalorder %s104, %s107
      %p116 = scmp.eq.s32.totalorder %s26, 1
      %p117 = por %p115, %p116
      %p118 = scmp.ne.s32.totalorder %s107, %s108
      %p119 = scmp.eq.s32.totalorder %s26, 0
      %p120 = por %p118, %p119
      %p121 = scmp.ne.s32.totalorder %s107, %s108
      %p122 = scmp.eq.s32.totalorder %s27, 1
      %p123 = por %p121, %p122
      %p125 = scmp.ne.s32.totalorder %s108, %s124
      %p126 = scmp.eq.s32.totalorder %s27, 0
      %p127 = por %p125, %p126
      %s129 = sadd.s32 %s128, 1
      %p132 = scmp.eq.s32.totalorder %s21, 1
      %p133 = scmp.ne.s32.totalorder %s128, %s130
      %p134 = scmp.eq.s32.totalorder %s21, 0
      %p135 = por %p133, %p134
      %p136 = scmp.ne.s32.totalorder %s128, %s130
      %p137 = scmp.eq.s32.totalorder %s26, 1
      %p138 = por %p136, %p137
      %p139 = scmp.ne.s32.totalorder %s130, %s131
      %p140 = scmp.eq.s32.totalorder %s26, 0
      %p141 = por %p139, %p140
      %p142 = scmp.ne.s32.totalorder %s130, %s131
      %p143 = scmp.eq.s32.totalorder %s27, 1
      %p144 = por %p142, %p143
      %p146 = scmp.ne.s32.totalorder %s131, %s145
      %p147 = scmp.eq.s32.totalorder %s27, 0
      %p148 = por %p146, %p147
      %s150 = sadd.s32 %s149, 1
      %p153 = scmp.eq.s32.totalorder %s21, 1
      %p154 = scmp.ne.s32.totalorder %s149, %s151
      %p155 = scmp.eq.s32.totalorder %s21, 0
      %p156 = por %p154, %p155
      %p157 = scmp.ne.s32.totalorder %s149, %s151
      %p158 = scmp.eq.s32.totalorder %s26, 1
      %p159 = por %p157, %p158
      %p160 = scmp.ne.s32.totalorder %s151, %s152
      %p161 = scmp.eq.s32.totalorder %s26, 0
      %p162 = por %p160, %p161
      %p163 = scmp.ne.s32.totalorder %s151, %s152
      %p164 = scmp.eq.s32.totalorder %s27, 1
      %p165 = por %p163, %p164
      %p167 = scmp.ne.s32.totalorder %s152, %s166
      %p168 = scmp.eq.s32.totalorder %s27, 0
      %p169 = por %p167, %p168
      %s171 = sadd.s32 %s170, 1
      %p174 = scmp.eq.s32.totalorder %s21, 1
      %p175 = scmp.ne.s32.totalorder %s170, %s172
      %p176 = scmp.eq.s32.totalorder %s21, 0
      %p177 = por %p175, %p176
      %p178 = scmp.ne.s32.totalorder %s170, %s172
      %p179 = scmp.eq.s32.totalorder %s26, 1
      %p180 = por %p178, %p179
      %p181 = scmp.ne.s32.totalorder %s172, %s173
      %p182 = scmp.eq.s32.totalorder %s26, 0
      %p183 = por %p181, %p182
      %p184 = scmp.ne.s32.totalorder %s172, %s173
      %p185 = scmp.eq.s32.totalorder %s27, 1
      %p186 = por %p184, %p185
      %p188 = scmp.ne.s32.totalorder %s173, %s187
      %p189 = scmp.eq.s32.totalorder %s27, 0
      %p190 = por %p188, %p189
      %s192 = sadd.s32 %s191, 1
      %p195 = scmp.eq.s32.totalorder %s21, 1
      %p196 = scmp.ne.s32.totalorder %s191, %s193
      %p197 = scmp.eq.s32.totalorder %s21, 0
      %p198 = por %p196, %p197
      %p199 = scmp.ne.s32.totalorder %s191, %s193
      %p200 = scmp.eq.s32.totalorder %s26, 1
      %p201 = por %p199, %p200
      %p202 = scmp.ne.s32.totalorder %s193, %s194
      %p203 = scmp.eq.s32.totalorder %s26, 0
      %p204 = por %p202, %p203
      %p205 = scmp.ne.s32.totalorder %s193, %s194
      %p206 = scmp.eq.s32.totalorder %s27, 1
      %p207 = por %p205, %p206
      %p209 = scmp.ne.s32.totalorder %s194, %s208
      %p210 = scmp.eq.s32.totalorder %s27, 0
      %p211 = por %p209, %p210
      %s213 = sadd.s32 %s212, 1
      %p216 = scmp.eq.s32.totalorder %s21, 1
      %p217 = scmp.ne.s32.totalorder %s212, %s214
      %p218 = scmp.eq.s32.totalorder %s21, 0
      %p219 = por %p217, %p218
      %p220 = scmp.ne.s32.totalorder %s212, %s214
      %p221 = scmp.eq.s32.totalorder %s26, 1
      %p222 = por %p220, %p221
      %p223 = scmp.ne.s32.totalorder %s214, %s215
      %p224 = scmp.eq.s32.totalorder %s26, 0
      %p225 = por %p223, %p224
      %p226 = scmp.ne.s32.totalorder %s214, %s215
      %p227 = scmp.eq.s32.totalorder %s27, 1
      %p228 = por %p226, %p227
      %p230 = scmp.ne.s32.totalorder %s215, %s229
      %p231 = scmp.eq.s32.totalorder %s27, 0
      %p232 = por %p230, %p231
      %s234 = sadd.s32 %s233, 1
      %p237 = scmp.eq.s32.totalorder %s21, 1
      %p238 = scmp.ne.s32.totalorder %s233, %s235
      %p239 = scmp.eq.s32.totalorder %s21, 0
      %p240 = por %p238, %p239
      %p241 = scmp.ne.s32.totalorder %s233, %s235
      %p242 = scmp.eq.s32.totalorder %s26, 1
      %p243 = por %p241, %p242
      %p244 = scmp.ne.s32.totalorder %s235, %s236
      %p245 = scmp.eq.s32.totalorder %s26, 0
      %p246 = por %p244, %p245
      %p247 = scmp.ne.s32.totalorder %s235, %s236
      %p248 = scmp.eq.s32.totalorder %s27, 1
      %p249 = por %p247, %p248
      %p251 = scmp.ne.s32.totalorder %s236, %s250
      %p252 = scmp.eq.s32.totalorder %s27, 0
      %p253 = por %p251, %p252
      %s254 = ssub.s32 %s21, %s28
      %p255 = scmp.eq.s32.totalorder %s254, 0
      %s257 = sadd.s32 %s256, 1
      %s258 = scalar_select %p255, %s256, %s257
      %p261 = pneg %p255
      %p262 = scmp.eq.s32.totalorder %s21, 1
      %p263 = por %p261, %p262
      %p264 = scmp.ne.s32.totalorder %s256, %s259
      %p265 = scmp.eq.s32.totalorder %s21, 0
      %p266 = por %p264, %p265
      %p267 = scmp.ne.s32.totalorder %s256, %s259
      %p268 = scmp.eq.s32.totalorder %s26, 1
      %p269 = por %p267, %p268
      %p270 = scmp.ne.s32.totalorder %s259, %s260
      %p271 = scmp.eq.s32.totalorder %s26, 0
      %p272 = por %p270, %p271
      %p273 = scmp.ne.s32.totalorder %s259, %s260
      %p274 = scmp.eq.s32.totalorder %s27, 1
      %p275 = por %p273, %p274
      %p277 = scmp.ne.s32.totalorder %s260, %s276
      %p278 = scmp.eq.s32.totalorder %s27, 0
      %p279 = por %p277, %p278
      %p280 = scmp.le.s32.totalorder 1, %s21
      %p281 = scmp.lt.s32.totalorder %s21, 3
      %p282 = pnand %p280, %p281
      %p283 = pneg %p282
      // Predicated region
      $region9: #{tpu_custom_call.1} parent=5 // pred_check
        _
      $region10: #{tpu_custom_call.1} parent=5 // pred_check_branch
        %285 = sbr.rel (%p282) target = $region12
      $region11: #{tpu_custom_call.1} parent=5 // pred_region
        %s286 = ssub.s32 %s21, 1
        // Predicated region
        $region13: #{tpu_custom_call.1} parent=11 // pred_check
          %p287 = pneg %p42
        $region14: #{tpu_custom_call.1} parent=11 // pred_check_branch
          %289 = sbr.rel (%p287) target = $region16
        $region15: #{tpu_custom_call.1} parent=11 // pred_region
          _
        $region16: #{tpu_custom_call.1} parent=11 // pred_fallthru
          _
        // Predicated region
        $region17: #{tpu_custom_call.1} parent=11 // pred_check
          %p290 = pneg %p141
        $region18: #{tpu_custom_call.1} parent=11 // pred_check_branch
          %292 = sbr.rel (%p290) target = $region20
        $region19: #{tpu_custom_call.1} parent=11 // pred_region
          _
        $region20: #{tpu_custom_call.1} parent=11 // pred_fallthru
          _
        // Predicated region
        $region21: #{tpu_custom_call.1} parent=11 // pred_check
          %p293 = pneg %p162
        $region22: #{tpu_custom_call.1} parent=11 // pred_check_branch
          %295 = sbr.rel (%p293) target = $region24
        $region23: #{tpu_custom_call.1} parent=11 // pred_region
          _
        $region24: #{tpu_custom_call.1} parent=11 // pred_fallthru
          _
        // Predicated region
        $region25: #{tpu_custom_call.1} parent=11 // pred_check
          %p296 = pneg %p183
        $region26: #{tpu_custom_call.1} parent=11 // pred_check_branch
          %298 = sbr.rel (%p296) target = $region28
        $region27: #{tpu_custom_call.1} parent=11 // pred_region
          _
        $region28: #{tpu_custom_call.1} parent=11 // pred_fallthru
          _
        // Predicated region
        $region29: #{tpu_custom_call.1} parent=11 // pred_check
          %p299 = pneg %p204
        $region30: #{tpu_custom_call.1} parent=11 // pred_check_branch
          %301 = sbr.rel (%p299) target = $region32
        $region31: #{tpu_custom_call.1} parent=11 // pred_region
          _
        $region32: #{tpu_custom_call.1} parent=11 // pred_fallthru
          _
        // Predicated region
        $region33: #{tpu_custom_call.1} parent=11 // pred_check
          %p302 = pneg %p225
        $region34: #{tpu_custom_call.1} parent=11 // pred_check_branch
          %304 = sbr.rel (%p302) target = $region36
        $region35: #{tpu_custom_call.1} parent=11 // pred_region
          %306 = vsyncadd [#allocation4], 0
          %s307 = sshll.u32 %s8, 4
          %s308 = int_to_ptr.hbm [resolvable:$true] %s307
          %s309 = sshll.u32 [#allocation3], 4
          %s310 = int_to_ptr.vmem [resolvable:$true] %s309
          %315 = dma.hbm_to_vmem [thread:$0]  %s308, 128, %s310, [#allocation4], 64, 64, 4
        $region36: #{tpu_custom_call.1} parent=11 // pred_fallthru
          _
        // Predicated region
        $region37: #{tpu_custom_call.1} parent=11 // pred_check
          %p316 = pneg %p246
        $region38: #{tpu_custom_call.1} parent=11 // pred_check_branch
          %318 = sbr.rel (%p316) target = $region40
        $region39: #{tpu_custom_call.1} parent=11 // pred_region
          _
        $region40: #{tpu_custom_call.1} parent=11 // pred_fallthru
          _
      $region12: #{tpu_custom_call.1} parent=5 // pred_fallthru
        _
      %p319 = scmp.lt.s32.totalorder %s21, 2
      // Predicated region
      $region41: #{tpu_custom_call.1} parent=5 // pred_check
        %p320 = pneg %p319
      $region42: #{tpu_custom_call.1} parent=5 // pred_check_branch
        %322 = sbr.rel (%p320) target = $region44
      $region43: #{tpu_custom_call.1} parent=5 // pred_region
        // Predicated region
        $region45: #{tpu_custom_call.1} parent=43 // pred_check
          %p323 = pneg %p62
        $region46: #{tpu_custom_call.1} parent=43 // pred_check_branch
          %325 = sbr.rel (%p323) target = $region48
        $region47: #{tpu_custom_call.1} parent=43 // pred_region
          %p326 = scmp.lt.s32.totalorder %s21, 1
          %s327 = scalar_select %p326, %s21, 1
          %s328 = smul.addr %s327, 4
          %s329 = smul.addr %s328, 8
          %s330 = scalar_lea.vmem %s1, %s329
        $region48: #{tpu_custom_call.1} parent=43 // pred_fallthru
          _
        // Predicated region
        $region49: #{tpu_custom_call.1} parent=43 // pred_check
          %p331 = pneg %p88
        $region50: #{tpu_custom_call.1} parent=43 // pred_check_branch
          %333 = sbr.rel (%p331) target = $region52
        $region51: #{tpu_custom_call.1} parent=43 // pred_region
          %p334 = scmp.lt.s32.totalorder %s21, 1
          %s335 = scalar_select %p334, %s21, 1
          %s336 = smul.addr %s335, 2
          %s337 = smul.addr %s336, 8
          %s338 = scalar_lea.vmem %s2, %s337
        $region52: #{tpu_custom_call.1} parent=43 // pred_fallthru
          _
        // Predicated region
        $region53: #{tpu_custom_call.1} parent=43 // pred_check
          %p339 = pneg %p114
        $region54: #{tpu_custom_call.1} parent=43 // pred_check_branch
          %341 = sbr.rel (%p339) target = $region56
        $region55: #{tpu_custom_call.1} parent=43 // pred_region
          %p342 = scmp.lt.s32.totalorder %s21, 1
          %s343 = scalar_select %p342, %s21, 1
          %s344 = smul.addr %s343, 2
          %s345 = smul.addr %s344, 8
          %s346 = scalar_lea.vmem %s3, %s345
        $region56: #{tpu_custom_call.1} parent=43 // pred_fallthru
          _
      $region44: #{tpu_custom_call.1} parent=5 // pred_fallthru
        _
      %p347 = scmp.le.s32.totalorder 1, %s21
      %p348 = scmp.lt.s32.totalorder %s21, 3
      %p349 = pnand %p347, %p348
      %p350 = pneg %p349
      // Predicated region
      $region57: #{tpu_custom_call.1} parent=5 // pred_check
        _
      $region58: #{tpu_custom_call.1} parent=5 // pred_check_branch
        %352 = sbr.rel (%p349) target = $region60
      $region59: #{tpu_custom_call.1} parent=5 // pred_region
        %s353 = ssub.s32 %s21, 1
        // Predicated region
        $region61: #{tpu_custom_call.1} parent=59 // pred_check
          %p354 = pneg %p225
        $region62: #{tpu_custom_call.1} parent=59 // pred_check_branch
          %356 = sbr.rel (%p354) target = $region64
        $region63: #{tpu_custom_call.1} parent=59 // pred_region
          %358 = dma.done [#allocation4], 128
        $region64: #{tpu_custom_call.1} parent=59 // pred_fallthru
          _
        %p359 = pneg %p42
        %p360 = pneg %p39
        %p361 = scmp.lt.s32.totalorder %s26, 1
        %s362 = scalar_select %p361, %s26, 1
        %s363 = smul.addr %s362, 4
        %s364 = smul.addr %s363, 8
        %s365 = scalar_lea.vmem %s1, %s364
        %p366 = pneg %p68
        %p367 = pneg %p65
        %p368 = scmp.lt.s32.totalorder %s26, 1
        %s369 = scalar_select %p368, %s26, 1
        %s370 = smul.addr %s369, 2
        %s371 = smul.addr %s370, 8
        %s372 = scalar_lea.vmem %s2, %s371
        %p373 = pneg %p94
        %p374 = pneg %p91
        %p375 = scmp.lt.s32.totalorder %s26, 1
        %s376 = scalar_select %p375, %s26, 1
        %s377 = smul.addr %s376, 2
        %s378 = smul.addr %s377, 8
        %s379 = scalar_lea.vmem %s3, %s378
        %p380 = pneg %p120
        %p381 = pneg %p117
        %p382 = pneg %p141
        %p383 = pneg %p138
        %p384 = pneg %p162
        %p385 = pneg %p159
        %p386 = pneg %p183
        %p387 = pneg %p180
        %p388 = pneg %p204
        %p389 = pneg %p201
        %p390 = pneg %p225
        %p391 = pneg %p222
        %p392 = pneg %p246
        %p393 = pneg %p243
        %p394 = pneg %p272
        %p395 = pneg %p269
        %s396 = sand.u32 %s259, 1
        %s397 = scalar_lea.sflag [#allocation5], %s396
        %s398 = sand.u32 %s259, 1
        %s399 = smul.addr %s398, 16
        %s400 = scalar_lea.vmem [#allocation6], %s399
        %p401 = scmp.lt.s32.totalorder %s26, 1
        %s402 = scalar_select %p401, %s26, 1
        %s403 = smul.addr %s402, 4
        %s404 = smul.addr %s403, 8
        %s405 = scalar_lea.vmem %s1, %s404
        %p406 = scmp.lt.s32.totalorder %s26, 1
        %s407 = scalar_select %p406, %s26, 1
        %s408 = smul.addr %s407, 2
        %s409 = smul.addr %s408, 8
        %s410 = scalar_lea.vmem %s2, %s409
        %p411 = scmp.lt.s32.totalorder %s26, 1
        %s412 = scalar_select %p411, %s26, 1
        %s413 = smul.addr %s412, 2
        %s414 = smul.addr %s413, 8
        %s415 = scalar_lea.vmem %s3, %s414
        %v417 = vld [vmem:[%s410] sm:$0xff]
        %v418 = vld [vmem:[%s410 + $0x8] sm:$0xff]
        %v419 = vld [vmem:[%s415] sm:$0xff]
        %v420 = vld [vmem:[%s415 + $0x8] sm:$0xff]
        %s421 = sld [smem:[#allocation2]]
        %v422 = vld [vmem:[%s4] sm:$0xf]
        %v423 = vld [vmem:[%s4 + $0x4] sm:$0xf]
        %v424 = vld [vmem:[%s5] sm:$0xf]
        %v425 = vld [vmem:[%s5 + $0x4] sm:$0xf]
        %v426 = vld [vmem:[%s6] sm:$0xf]
        %v427 = vld [vmem:[%s6 + $0x4] sm:$0xf]
        %v428 = vld [vmem:[%s7] sm:$0xf]
        %v429 = vld [vmem:[%s7 + $0x4] sm:$0xf]
        %v430 = vld [vmem:[#allocation3] sm:$0xf]
        %v431 = vld [vmem:[#allocation3 + $0x4] sm:$0xf]
        %v432 = vld [vmem:[%s9] sm:$0xf]
        %v433 = vld [vmem:[%s9 + $0x4] sm:$0xf]
        %v434 = vld [vmem:[%s405] sm:$0xff]
        %v435 = vld [vmem:[%s405 + $0x8] sm:$0xff]
        %v436 = vld [vmem:[%s405 + $0x10] sm:$0xff]
        %v437 = vld [vmem:[%s405 + $0x18] sm:$0xff]
        %v438 = vpack.c.bf16 %v435, %v434
        %v439 = vpack.c.bf16 %v437, %v436
        %v442 = vunpack.c.l.b16 %v430
        %v443 = vunpack.c.l.b16 %v431
        %v444 = vpack.c.b16 %v443, %v442
        %vm446 = vcmask 130048
        %v448 = vsel %vm446, %v438, 0
        %v451 = vsel %vm446, %v439, 0
        %453 = vmatpush.bf16.msra.mxu0 0
        %454 = vmatpush.bf16.msra.mxu0 0
        %455 = vmatpush.bf16.msra.mxu0 0
        %456 = vmatpush.bf16.msra.mxu0 0
        %457 = vmatpush.bf16.msra.mxu0 0
        %458 = vmatpush.bf16.msra.mxu0 0
        %459 = vmatpush.bf16.msra.mxu0 0
        %460 = vmatpush.bf16.msra.mxu0 %v444
        %461 = vmatmul.bf16.gmra.mxu0 %v448
        %v462 = vpop.f32.mrf.mxu0
        %v463 = vadd.f32 0.0, %v462
        %v464 = vpop.f32.mrf.mxu0
        %v465 = vadd.f32 0.0, %v464
        %466 = vmatmul.bf16.gmra.mxu0 %v451
        %v467 = vpop.f32.mrf.mxu0
        %v468 = vadd.f32 0.0, %v467
        %v469 = vpop.f32.mrf.mxu0
        %v470 = vadd.f32 0.0, %v469
        %471 = vdwg.mxu0
        %v474 = vunpack.c.l.b16 %v432
        %v475 = vunpack.c.l.b16 %v433
        %v476 = vpack.c.b16 %v475, %v474
        %478 = vmatpush.bf16.msra.mxu0 0
        %479 = vmatpush.bf16.msra.mxu0 0
        %480 = vmatpush.bf16.msra.mxu0 0
        %481 = vmatpush.bf16.msra.mxu0 0
        %482 = vmatpush.bf16.msra.mxu0 0
        %483 = vmatpush.bf16.msra.mxu0 0
        %484 = vmatpush.bf16.msra.mxu0 0
        %485 = vmatpush.bf16.msra.mxu0 %v476
        %486 = vmatmul.bf16.gmra.mxu0 %v448
        %v487 = vpop.f32.mrf.mxu0
        %v488 = vadd.f32 0.0, %v487
        %v489 = vpop.f32.mrf.mxu0
        %v490 = vadd.f32 0.0, %v489
        %491 = vmatmul.bf16.gmra.mxu0 %v451
        %v492 = vpop.f32.mrf.mxu0
        %v493 = vadd.f32 0.0, %v492
        %v494 = vpop.f32.mrf.mxu0
        %v495 = vadd.f32 0.0, %v494
        %496 = vdwg.mxu0
        %v497 = vpack.c.bf16 %v465, %v463
        %v500 = vunpack.c.l.b16 %v422
        %v501 = vunpack.c.l.b16 %v423
        %v502 = vpack.c.b16 %v501, %v500
        %v504 = vsel %vm446, %v502, 0
        %506 = vmatpush.bf16.msra.mxu0 0
        %507 = vmatpush.bf16.msra.mxu0 0
        %508 = vmatpush.bf16.msra.mxu0 0
        %509 = vmatpush.bf16.msra.mxu0 0
        %510 = vmatpush.bf16.msra.mxu0 0
        %511 = vmatpush.bf16.msra.mxu0 0
        %512 = vmatpush.bf16.msra.mxu0 0
        %513 = vmatpush.bf16.msra.mxu0 %v497
        %514 = vmatmul.bf16.gmra.mxu0 %v504
        %v515 = vpop.f32.mrf.mxu0
        %v516 = vadd.f32 0.0, %v515
        %v517 = vpop.f32.mrf.mxu0
        %v518 = vadd.f32 0.0, %v517
        %519 = vdwg.mxu0
        %v520 = vpack.c.bf16 %v490, %v488
        %v523 = vunpack.c.l.b16 %v424
        %v524 = vunpack.c.l.b16 %v425
        %v525 = vpack.c.b16 %v524, %v523
        %v527 = vsel %vm446, %v525, 0
        %529 = vmatpush.bf16.msra.mxu0 0
        %530 = vmatpush.bf16.msra.mxu0 0
        %531 = vmatpush.bf16.msra.mxu0 0
        %532 = vmatpush.bf16.msra.mxu0 0
        %533 = vmatpush.bf16.msra.mxu0 0
        %534 = vmatpush.bf16.msra.mxu0 0
        %535 = vmatpush.bf16.msra.mxu0 0
        %536 = vmatpush.bf16.msra.mxu0 %v520
        %537 = vmatmul.bf16.gmra.mxu0 %v527
        %v538 = vpop.f32.mrf.mxu0
        %v539 = vadd.f32 0.0, %v538
        %v540 = vpop.f32.mrf.mxu0
        %v541 = vadd.f32 0.0, %v540
        %542 = vdwg.mxu0
        %v543 = vadd.f32 %v463, %v488
        %v544 = vadd.f32 %v465, %v490
        %v545 = vpack.c.bf16 %v544, %v543
        %v548 = vunpack.c.l.b16 %v426
        %v549 = vunpack.c.l.b16 %v427
        %v550 = vpack.c.b16 %v549, %v548
        %v552 = vsel %vm446, %v550, 0
        %554 = vmatpush.bf16.msra.mxu0 0
        %555 = vmatpush.bf16.msra.mxu0 0
        %556 = vmatpush.bf16.msra.mxu0 0
        %557 = vmatpush.bf16.msra.mxu0 0
        %558 = vmatpush.bf16.msra.mxu0 0
        %559 = vmatpush.bf16.msra.mxu0 0
        %560 = vmatpush.bf16.msra.mxu0 0
        %561 = vmatpush.bf16.msra.mxu0 %v545
        %562 = vmatmul.bf16.gmra.mxu0 %v552
        %v563 = vpop.f32.mrf.mxu0
        %v564 = vadd.f32 0.0, %v563
        %v565 = vpop.f32.mrf.mxu0
        %v566 = vadd.f32 0.0, %v565
        %567 = vdwg.mxu0
        %v568 = vsub.f32 %v516, %v539
        %v569 = vsub.f32 %v518, %v541
        %v570 = vsub.f32 %v564, %v516
        %v571 = vsub.f32 %v566, %v518
        %v572 = vsub.f32 %v570, %v539
        %v573 = vsub.f32 %v571, %v541
        %v574 = vpack.c.bf16 %v470, %v468
        %575 = vmatpush.bf16.msra.mxu0 0
        %576 = vmatpush.bf16.msra.mxu0 0
        %577 = vmatpush.bf16.msra.mxu0 0
        %578 = vmatpush.bf16.msra.mxu0 0
        %579 = vmatpush.bf16.msra.mxu0 0
        %580 = vmatpush.bf16.msra.mxu0 0
        %581 = vmatpush.bf16.msra.mxu0 0
        %582 = vmatpush.bf16.msra.mxu0 %v574
        %583 = vmatmul.bf16.gmra.mxu0 %v504
        %v584 = vpop.f32.mrf.mxu0
        %v585 = vadd.f32 0.0, %v584
        %v586 = vpop.f32.mrf.mxu0
        %v587 = vadd.f32 0.0, %v586
        %588 = vdwg.mxu0
        %v589 = vpack.c.bf16 %v495, %v493
        %590 = vmatpush.bf16.msra.mxu0 0
        %591 = vmatpush.bf16.msra.mxu0 0
        %592 = vmatpush.bf16.msra.mxu0 0
        %593 = vmatpush.bf16.msra.mxu0 0
        %594 = vmatpush.bf16.msra.mxu0 0
        %595 = vmatpush.bf16.msra.mxu0 0
        %596 = vmatpush.bf16.msra.mxu0 0
        %597 = vmatpush.bf16.msra.mxu0 %v589
        %598 = vmatmul.bf16.gmra.mxu0 %v527
        %v599 = vpop.f32.mrf.mxu0
        %v600 = vadd.f32 0.0, %v599
        %v601 = vpop.f32.mrf.mxu0
        %v602 = vadd.f32 0.0, %v601
        %603 = vdwg.mxu0
        %v604 = vadd.f32 %v468, %v493
        %v605 = vadd.f32 %v470, %v495
        %v606 = vpack.c.bf16 %v605, %v604
        %607 = vmatpush.bf16.msra.mxu0 0
        %608 = vmatpush.bf16.msra.mxu0 0
        %609 = vmatpush.bf16.msra.mxu0 0
        %610 = vmatpush.bf16.msra.mxu0 0
        %611 = vmatpush.bf16.msra.mxu0 0
        %612 = vmatpush.bf16.msra.mxu0 0
        %613 = vmatpush.bf16.msra.mxu0 0
        %614 = vmatpush.bf16.msra.mxu0 %v606
        %615 = vmatmul.bf16.gmra.mxu0 %v552
        %v616 = vpop.f32.mrf.mxu0
        %v617 = vadd.f32 0.0, %v616
        %v618 = vpop.f32.mrf.mxu0
        %v619 = vadd.f32 0.0, %v618
        %620 = vdwg.mxu0
        %v621 = vsub.f32 %v585, %v600
        %v622 = vsub.f32 %v587, %v602
        %v623 = vsub.f32 %v617, %v585
        %v624 = vsub.f32 %v619, %v587
        %v625 = vsub.f32 %v623, %v600
        %v626 = vsub.f32 %v624, %v602
        %v627 = vmul.f32 %v417, %v568
        %v628 = vmul.f32 %v418, %v569
        %v629 = vmul.f32 %v419, %v572
        %v630 = vmul.f32 %v420, %v573
        %v631 = vadd.f32 %v627, %v629
        %v632 = vadd.f32 %v628, %v630
        %v633 = vstv %s421
        %v634 = vmul.f32 %v633, %v621
        %v635 = vmul.f32 %v633, %v622
        %v636 = vadd.f32 %v631, %v634
        %v637 = vadd.f32 %v632, %v635
        %v638 = vmul.f32 %v417, %v572
        %v639 = vmul.f32 %v418, %v573
        %v640 = vmul.f32 %v419, %v568
        %v641 = vmul.f32 %v420, %v569
        %v642 = vsub.f32 %v638, %v640
        %v643 = vsub.f32 %v639, %v641
        %v644 = vmul.f32 %v633, %v625
        %v645 = vmul.f32 %v633, %v626
        %v646 = vadd.f32 %v642, %v644
        %v647 = vadd.f32 %v643, %v645
        %v648 = vmul.f32 %v417, %v417
        %v649 = vmul.f32 %v418, %v418
        %v650 = vmul.f32 %v419, %v419
        %v651 = vmul.f32 %v420, %v420
        %v652 = vadd.f32 %v648, %v650
        %v653 = vadd.f32 %v649, %v651
        %v654 = vadd.f32 %v652, %v633
        %v655 = vadd.f32 %v653, %v633
        %v656 = vmul.f32 %v654, 256.0
        %v657 = vmul.f32 %v655, 256.0
        %v658 = vrcp.pop %v656
        %v659 = vrcp.pop %v657
        %v660 = vmul.f32 %v636, %v658
        %v661 = vmul.f32 %v637, %v659
        %v662 = vmul.f32 %v646, %v658
        %v663 = vmul.f32 %v647, %v659
        %v664 = vpack.c.bf16 %v661, %v660
        %665 = vmatpush.bf16.msra.mxu0 0
        %666 = vmatpush.bf16.msra.mxu0 0
        %667 = vmatpush.bf16.msra.mxu0 0
        %668 = vmatpush.bf16.msra.mxu0 0
        %669 = vmatpush.bf16.msra.mxu0 0
        %670 = vmatpush.bf16.msra.mxu0 0
        %671 = vmatpush.bf16.msra.mxu0 0
        %672 = vmatpush.bf16.msra.mxu0 %v664
        %673 = vmatmul.bf16.gmra.mxu0 %v504
        %v674 = vpop.f32.mrf.mxu0
        %v675 = vadd.f32 0.0, %v674
        %v676 = vpop.f32.mrf.mxu0
        %v677 = vadd.f32 0.0, %v676
        %678 = vdwg.mxu0
        %v679 = vpack.c.bf16 %v663, %v662
        %680 = vmatpush.bf16.msra.mxu0 0
        %681 = vmatpush.bf16.msra.mxu0 0
        %682 = vmatpush.bf16.msra.mxu0 0
        %683 = vmatpush.bf16.msra.mxu0 0
        %684 = vmatpush.bf16.msra.mxu0 0
        %685 = vmatpush.bf16.msra.mxu0 0
        %686 = vmatpush.bf16.msra.mxu0 0
        %687 = vmatpush.bf16.msra.mxu0 %v679
        %688 = vmatmul.bf16.gmra.mxu0 %v527
        %v689 = vpop.f32.mrf.mxu0
        %v690 = vadd.f32 0.0, %v689
        %v691 = vpop.f32.mrf.mxu0
        %v692 = vadd.f32 0.0, %v691
        %693 = vdwg.mxu0
        %v694 = vadd.f32 %v660, %v662
        %v695 = vadd.f32 %v661, %v663
        %v696 = vpack.c.bf16 %v695, %v694
        %v699 = vunpack.c.l.b16 %v428
        %v700 = vunpack.c.l.b16 %v429
        %v701 = vpack.c.b16 %v700, %v699
        %v703 = vsel %vm446, %v701, 0
        %705 = vmatpush.bf16.msra.mxu0 0
        %706 = vmatpush.bf16.msra.mxu0 0
        %707 = vmatpush.bf16.msra.mxu0 0
        %708 = vmatpush.bf16.msra.mxu0 0
        %709 = vmatpush.bf16.msra.mxu0 0
        %710 = vmatpush.bf16.msra.mxu0 0
        %711 = vmatpush.bf16.msra.mxu0 0
        %712 = vmatpush.bf16.msra.mxu0 %v696
        %713 = vmatmul.bf16.gmra.mxu0 %v703
        %v714 = vpop.f32.mrf.mxu0
        %v715 = vadd.f32 0.0, %v714
        %v716 = vpop.f32.mrf.mxu0
        %v717 = vadd.f32 0.0, %v716
        %718 = vdwg.mxu0
        %v719 = vadd.f32 %v675, %v690
        %v720 = vadd.f32 %v677, %v692
        %v721 = vsub.f32 %v715, %v675
        %v722 = vsub.f32 %v717, %v677
        %v723 = vadd.f32 %v721, %v690
        %v724 = vadd.f32 %v722, %v692
        %v725 = vpack.c.bf16 %v720, %v719
        %v726 = vpack.c.bf16 %v724, %v723
        %v728 = vsel %vm446, %v726, 0
        %730 = vmatpush.bf16.msra.mxu0 0
        %731 = vmatpush.bf16.msra.mxu0 0
        %732 = vmatpush.bf16.msra.mxu0 0
        %733 = vmatpush.bf16.msra.mxu0 0
        %734 = vmatpush.bf16.msra.mxu0 0
        %735 = vmatpush.bf16.msra.mxu0 0
        %736 = vmatpush.bf16.msra.mxu0 0
        %737 = vmatpush.bf16.msra.mxu0 %v476
        %738 = vmatmul.bf16.gmra.mxu0 %v728
        %v739 = vpop.f32.mrf.mxu0
        %v740 = vadd.f32 0.0, %v739
        %v741 = vpop.f32.mrf.mxu0
        %v742 = vadd.f32 0.0, %v741
        %743 = vdwg.mxu0
        %v745 = vsel %vm446, %v725, 0
        %747 = vmatpush.bf16.msra.mxu0 0
        %748 = vmatpush.bf16.msra.mxu0 0
        %749 = vmatpush.bf16.msra.mxu0 0
        %750 = vmatpush.bf16.msra.mxu0 0
        %751 = vmatpush.bf16.msra.mxu0 0
        %752 = vmatpush.bf16.msra.mxu0 0
        %753 = vmatpush.bf16.msra.mxu0 0
        %754 = vmatpush.bf16.msra.mxu0 %v444
        %755 = vmatmul.bf16.gmra.mxu0 %v745
        %v756 = vpop.f32.mrf.mxu0
        %v757 = vadd.f32 %v740, %v756
        %v758 = vpop.f32.mrf.mxu0
        %v759 = vadd.f32 %v742, %v758
        %760 = vdwg.mxu0
        %761 = vst.msk [vmem:[%s400] sm:$0xff] %vm446, %v757
        %762 = vst.msk [vmem:[%s400 + $0x8] sm:$0xff] %vm446, %v759
        %s763 = sand.u32 %s259, 1
        %s764 = scalar_lea.sflag [#allocation5], %s763
        %s765 = sand.u32 %s259, 1
        %s766 = smul.addr %s765, 16
        %s767 = scalar_lea.vmem [#allocation6], %s766
        // Predicated region
        $region65: #{tpu_custom_call.1} parent=59 // pred_check
          %p768 = pneg %p269
        $region66: #{tpu_custom_call.1} parent=59 // pred_check_branch
          %770 = sbr.rel (%p768) target = $region68
        $region67: #{tpu_custom_call.1} parent=59 // pred_region
          %772 = vsyncadd %s764, 0
          %s773 = smul.addr %s26, 2
          %s774 = smul.addr %s773, 8
          %s775 = scalar_lea.hbm %s10, %s774
          %s776 = sshll.u32 %s767, 4
          %s777 = int_to_ptr.vmem [resolvable:$true] %s776
          %s778 = sshll.u32 %s775, 4
          %s779 = int_to_ptr.hbm [resolvable:$true] %s778
          %784 = dma.vmem_to_hbm [thread:$0]  %s777, 256, %s779, %s764, 128, 128, 8
        $region68: #{tpu_custom_call.1} parent=59 // pred_fallthru
          _
      $region60: #{tpu_custom_call.1} parent=5 // pred_fallthru
        _
      %p785 = scmp.le.s32.totalorder 2, %s21
      // Predicated region
      $region69: #{tpu_custom_call.1} parent=5 // pred_check
        %p786 = pneg %p785
      $region70: #{tpu_custom_call.1} parent=5 // pred_check_branch
        %788 = sbr.rel (%p786) target = $region72
      $region71: #{tpu_custom_call.1} parent=5 // pred_region
        %s789 = ssub.s32 %s21, 2
        // Predicated region
        $region73: #{tpu_custom_call.1} parent=71 // pred_check
          %p790 = pneg %p275
        $region74: #{tpu_custom_call.1} parent=71 // pred_check_branch
          %792 = sbr.rel (%p790) target = $region76
        $region75: #{tpu_custom_call.1} parent=71 // pred_region
          %s793 = sand.u32 %s260, 1
          %s794 = scalar_lea.sflag [#allocation5], %s793
          %s795 = sand.u32 %s260, 1
          %s796 = smul.addr %s795, 16
          %s797 = scalar_lea.vmem [#allocation6], %s796
          %799 = dma.done %s794, 256
        $region76: #{tpu_custom_call.1} parent=71 // pred_fallthru
          _
      $region72: #{tpu_custom_call.1} parent=5 // pred_fallthru
        _
    $region6: #{tpu_custom_call.1} parent=1 // loop_footer
      %s25 = sadd.s32 1, %s21
    $region7: #{tpu_custom_call.1} parent=1 // loop_footer_branch
      %20 = sbr.rel target = $region3
    $region8: #{tpu_custom_call.1} parent=1 // loop_exit
      _
    %800 = vsyncpa [#allocation4], 1
    %s801 = scalar_lea.sflag [#allocation4], 1
    %802 = vsyncpa %s801, 1
    %803 = vsyncpa [#allocation5], 1
    %s804 = scalar_lea.sflag [#allocation5], 1
    %805 = vsyncpa %s804, 1

</llo_original>
